<compile_context>
chip_gen: v7x
topology: tpu7x:2x2x1
jax: 0.10.0
libtpu: 0.0.40
codegen_flags: <defaults>
</compile_context>

<pallas_src>
import functools

import jax
import jax.numpy as jnp
from jax.experimental import pallas as pl
from jax.experimental.pallas import tpu as pltpu


def _round_up(x, m):
    return ((x + m - 1) // m) * m


# ----------------------------------------------------------------------------
# Kernels
# ----------------------------------------------------------------------------
def _linear_kernel_direct(x_ref, w_ref, b_ref, o_ref, *, compute_dtype):
    """f32 output: accumulate straight into o_ref (no scratch, no finalize copy)."""
    k = pl.program_id(2)
    partial = jnp.dot(
        x_ref[...].astype(compute_dtype),
        w_ref[...].astype(compute_dtype),
        preferred_element_type=jnp.float32,
    )

    @pl.when(k == 0)
    def _():
        o_ref[...] = partial          # direct write: skip zero-fill + reload

    @pl.when(k > 0)
    def _():
        o_ref[...] += partial

    @pl.when(k == pl.num_programs(2) - 1)
    def _():
        o_ref[...] += b_ref[...]      # bias (1, tn) broadcasts; added exactly once


def _linear_kernel_scratch(x_ref, w_ref, b_ref, o_ref, acc_ref, *, compute_dtype):
    """Low-precision output: keep an f32 VMEM accumulator, cast at finalize."""
    k = pl.program_id(2)
    partial = jnp.dot(
        x_ref[...].astype(compute_dtype),
        w_ref[...].astype(compute_dtype),
        preferred_element_type=jnp.float32,
    )

    @pl.when(k == 0)
    def _():
        acc_ref[...] = partial

    @pl.when(k > 0)
    def _():
        acc_ref[...] += partial

    @pl.when(k == pl.num_programs(2) - 1)
    def _():
        o_ref[...] = (acc_ref[...] + b_ref[...]).astype(o_ref.dtype)


# ----------------------------------------------------------------------------
# Tile / VMEM heuristics (pure Python on static shapes)
# ----------------------------------------------------------------------------
def _vmem_limit_bytes():
    """Per-generation scoped-VMEM limit with headroom.

    Never hand the compiler the full physical VMEM:
      v5e/v6e (128 MiB physical) -> 96 MiB limit,  v7x (64 MiB) -> 48 MiB limit.
    """
    try:
        cap = int(pltpu.get_tpu_info().vmem_capacity_bytes)
    except Exception:
        cap = 64 * 1024 * 1024        # conservative fallback (= v7x physical)
    return min(cap * 3 // 4, 112 * 1024 * 1024)


def _split(dim, max_tile, align):
    """Largest aligned tile <= max_tile splitting `dim` with minimal padding."""
    max_tile = max(align, (min(max_tile, dim) // align) * align)
    n = -(-dim // max_tile)                       # number of blocks
    return _round_up(-(-dim // n), align)


def _choose_tiles(batch, in_dim, out_dim, in_bytes, out_bytes, acc_bytes,
                  sublane, budget, tm_req, tn_req, tk_req):
    m_pad = _round_up(batch, sublane)
    n_pad = _round_up(out_dim, 128)
    k_pad = _round_up(in_dim, 128)

    # Small-M (decode-style) linears are HBM-bound on the weight stream:
    # keep all of M in one tile and grow tk toward full K so every weight
    # byte is streamed exactly once.
    small_m = m_pad <= 256
    tm_max = tm_req if tm_req else (m_pad if small_m else 512)
    tn_max = tn_req if tn_req else 512
    tk_max = tk_req if tk_req else (4096 if small_m else 1024)

    def vmem_use(tm, tn, tk):
        # double-buffered x / w / bias tiles + double-buffered output tile
        # (+ f32 accumulator only for the scratch path)
        return (2 * (tm * tk + tk * tn + 8 * tn) * in_bytes
                + 2 * tm * tn * out_bytes
                + tm * tn * acc_bytes)

    tm = _split(m_pad, tm_max, sublane)
    tn = _split(n_pad, tn_max, 128)
    tk = _split(k_pad, tk_max, 128)

    # Shrink tk, then tn, then tm until the pipeline fits the VMEM budget.
    while vmem_use(tm, tn, tk) > budget and tk > 128:
        tk = _split(k_pad, tk // 2, 128)
    while vmem_use(tm, tn, tk) > budget and tn > 128:
        tn = _split(n_pad, tn // 2, 128)
    while vmem_use(tm, tn, tk) > budget and tm > sublane:
        tm = _split(m_pad, tm // 2, sublane)

    # v7x has 2 TensorCores: make sure the "parallel" (i, j) grid has >= 2
    # blocks so both cores get work (harmless on the single-TC v5e/v6e).
    if tn_req is None and tn > 128:
        gm = _round_up(m_pad, tm) // tm
        gn = _round_up(n_pad, tn) // tn
        if gm * gn < 2:
            tn = _split(n_pad, tn // 2, 128)

    return tm, tn, tk


# ----------------------------------------------------------------------------
# pallas_call wrapper
# ----------------------------------------------------------------------------
@functools.partial(
    jax.jit,
    static_argnames=("tm", "tn", "tk", "vmem_limit", "compute_dtype"))
def _linear_pallas_call(x, w, b, *, tm, tn, tk, vmem_limit, compute_dtype):
    compute_dtype = jnp.dtype(compute_dtype)
    batch, in_dim = x.shape
    _, out_dim = w.shape
    out_dtype = jnp.dtype(x.dtype)

    M = _round_up(batch, tm)
    N = _round_up(out_dim, tn)
    K = _round_up(in_dim, tk)

    # Pad only when strictly required (K must be zero-padded for the reduction;
    # jnp.pad is an extra HBM pass, so skip it for already-aligned shapes).
    x_p = x if (batch, in_dim) == (M, K) else jnp.pad(
        x, ((0, M - batch), (0, K - in_dim)))
    w_p = w if (in_dim, out_dim) == (K, N) else jnp.pad(
        w, ((0, K - in_dim), (0, N - out_dim)))
    b_p = b.reshape(1, out_dim)
    if out_dim != N:
        b_p = jnp.pad(b_p, ((0, 0), (0, N - out_dim)))

    grid = (M // tm, N // tn, K // tk)

    direct = out_dtype == jnp.float32
    kernel = functools.partial(
        _linear_kernel_direct if direct else _linear_kernel_scratch,
        compute_dtype=compute_dtype)
    scratch = [] if direct else [pltpu.VMEM((tm, tn), jnp.float32)]

    in_bytes = jnp.dtype(x.dtype).itemsize
    # Actual streamed HBM traffic: x re-read once per N block, w once per M block.
    cost = pl.CostEstimate(
        flops=2 * M * N * K,
        transcendentals=0,
        bytes_accessed=int((x_p.size * (N // tn) + w_p.size * (M // tm)
                            + b_p.size) * in_bytes
                           + M * N * out_dtype.itemsize),
    )

    out = pl.pallas_call(
        kernel,
        out_shape=jax.ShapeDtypeStruct((M, N), out_dtype),
        grid_spec=pltpu.PrefetchScalarGridSpec(
            num_scalar_prefetch=0,
            grid=grid,
            in_specs=[
                # x tile follows (i, k); weight tile follows (k, j).
                pl.BlockSpec((tm, tk), lambda i, j, k: (i, k)),
                pl.BlockSpec((tk, tn), lambda i, j, k: (k, j)),
                # Bias block is constant across K -> DMA'd once per (i, j).
                pl.BlockSpec((1, tn), lambda i, j, k: (0, j)),
            ],
            out_specs=pl.BlockSpec((tm, tn), lambda i, j, k: (i, j)),
            scratch_shapes=scratch,
        ),
        compiler_params=pltpu.CompilerParams(
            dimension_semantics=("parallel", "parallel", "arbitrary"),
            vmem_limit_bytes=vmem_limit,
        ),
        cost_estimate=cost,
    )(x_p, w_p, b_p)

    if (M, N) != (batch, out_dim):
        out = out[:batch, :out_dim]
    return out


def linear_pallas(x, w, b, *, tm=None, tn=None, tk=None, compute_dtype=None):
    """y = x @ w + b  (forward of the PyTorch `Linear` module).

    compute_dtype=jnp.bfloat16 casts the MXU operands to bf16 (f32 accumulate)
    for 2-4x MXU throughput; default (None) keeps exact input-dtype semantics.
    """
    batch, in_dim = x.shape
    in_dim_w, out_dim = w.shape
    assert in_dim == in_dim_w and b.shape == (out_dim,)

    compute_dtype = jnp.dtype(compute_dtype if compute_dtype is not None
                              else x.dtype)
    out_dtype = jnp.dtype(x.dtype)
    in_bytes = jnp.dtype(x.dtype).itemsize
    sublane = 16 if in_bytes == 2 else 8           # bf16 sublane packing is 16

    vmem_limit = int(_vmem_limit_bytes())
    budget = int(vmem_limit * 0.85)                # headroom for internal scratch

    tm, tn, tk = _choose_tiles(
        batch, in_dim, out_dim, in_bytes, out_dtype.itemsize,
        0 if out_dtype == jnp.float32 else 4,
        sublane, budget, tm, tn, tk)

    return _linear_pallas_call(
        x, w, b, tm=tm, tn=tn, tk=tk,
        vmem_limit=vmem_limit, compute_dtype=compute_dtype.name)


if __name__ == "__main__":
    key = jax.random.PRNGKey(0)
    k_x, k_w, k_b, k_x2, k_w2, k_b2 = jax.random.split(key, 6)

    # Toy shapes matching the module: Linear(in_dim=32, out_dim=16), batch=8.
    batch, in_dim, out_dim = 8, 32, 16
    w = jax.random.normal(k_w, (in_dim, out_dim), dtype=jnp.float32)
    b = jax.random.normal(k_b, (out_dim,), dtype=jnp.float32)
    x = jax.random.normal(k_x, (batch, in_dim), dtype=jnp.float32)

    y = linear_pallas(x, w, b)
    jax.block_until_ready(y)
    y_ref = x @ w + b
    assert y.shape == (batch, out_dim)
    assert jnp.allclose(y, y_ref, atol=1e-5, rtol=1e-5)

    # Second check: explicit (1, 2, 3) grid exercising the tiled K-reduction /
    # direct-into-o_ref accumulation path with no wrapper padding needed.
    b2_, in2, out2 = 128, 384, 256
    w2 = jax.random.normal(k_w2, (in2, out2), dtype=jnp.float32)
    bb2 = jax.random.normal(k_b2, (out2,), dtype=jnp.float32)
    x2 = jax.random.normal(k_x2, (b2_, in2), dtype=jnp.float32)

    y2 = linear_pallas(x2, w2, bb2, tm=128, tn=128, tk=128)
    jax.block_until_ready(y2)
    y2_ref = x2 @ w2 + bb2
    assert y2.shape == (b2_, out2)
    assert jnp.allclose(y2, y2_ref, atol=2e-4, rtol=2e-5)

    print("KERNEL_OK")
</pallas_src>

<mosaic_0001>
module attributes {stable_mosaic.version = 11 : i64} {
  func.func @_linear_kernel_direct(%arg0: i32, %arg1: i32, %arg2: i32, %arg3: memref<8x128xf32, #tpu.memory_space<vmem>>, %arg4: memref<128x128xf32, #tpu.memory_space<vmem>>, %arg5: memref<1x128xf32, #tpu.memory_space<vmem>>, %arg6: memref<8x128xf32, #tpu.memory_space<vmem>>) attributes {dimension_semantics = [#tpu.dimension_semantics<parallel>, #tpu.dimension_semantics<parallel>, #tpu.dimension_semantics<arbitrary>], iteration_bounds = array<i64: 1, 1, 1>, scalar_prefetch = 0 : i64, scratch_operands = 0 : i64, tpu.core_type = #tpu.core_type<tc>, window_params = [{transform_indices = @transform_0, window_bounds = array<i64: 8, 128>}, {transform_indices = @transform_1, window_bounds = array<i64: 128, 128>}, {transform_indices = @transform_2, window_bounds = array<i64: 1, 128>}, {transform_indices = @transform_3, window_bounds = array<i64: 8, 128>}]} {
    %c0 = arith.constant 0 : index
    %c0_0 = arith.constant 0 : index
    %0 = vector.load %arg3[%c0, %c0_0] : memref<8x128xf32, #tpu.memory_space<vmem>>, vector<8x128xf32>
    %c0_1 = arith.constant 0 : index
    %c0_2 = arith.constant 0 : index
    %1 = vector.load %arg4[%c0_1, %c0_2] : memref<128x128xf32, #tpu.memory_space<vmem>>, vector<128x128xf32>
    %cst = arith.constant dense<0.000000e+00> : vector<8x128xf32>
    %2 = tpu.matmul %0, %1, %cst {dimension_numbers = #tpu.dot_dimension_numbers<[1], [0], [0], [1], [0, 0, 1, 1], [], []>} : vector<8x128xf32>, vector<128x128xf32>, vector<8x128xf32> -> vector<8x128xf32>
    %c0_i32 = arith.constant 0 : i32
    %3 = arith.cmpi eq, %arg2, %c0_i32 : i32
    %4 = arith.extui %3 : i1 to i32
    %c0_i32_3 = arith.constant 0 : i32
    %5 = arith.cmpi ne, %4, %c0_i32_3 : i32
    scf.if %5 {
      %c0_8 = arith.constant 0 : index
      %c0_9 = arith.constant 0 : index
      %12 = vector.load %arg6[%c0_8, %c0_9] : memref<8x128xf32, #tpu.memory_space<vmem>>, vector<8x128xf32>
      tpu.vector_store %arg6[%c0_8, %c0_9], %2 {strides = array<i32>} : memref<8x128xf32, #tpu.memory_space<vmem>>, vector<8x128xf32>,
    } else {
    }
    %c0_i32_4 = arith.constant 0 : i32
    %6 = arith.cmpi sgt, %arg2, %c0_i32_4 : i32
    %7 = arith.extui %6 : i1 to i32
    %c0_i32_5 = arith.constant 0 : i32
    %8 = arith.cmpi ne, %7, %c0_i32_5 : i32
    scf.if %8 {
      %c0_8 = arith.constant 0 : index
      %c0_9 = arith.constant 0 : index
      %12 = vector.load %arg6[%c0_8, %c0_9] : memref<8x128xf32, #tpu.memory_space<vmem>>, vector<8x128xf32>
      %13 = arith.addf %12, %2 : vector<8x128xf32>
      %c0_10 = arith.constant 0 : index
      %c0_11 = arith.constant 0 : index
      %14 = vector.load %arg6[%c0_10, %c0_11] : memref<8x128xf32, #tpu.memory_space<vmem>>, vector<8x128xf32>
      tpu.vector_store %arg6[%c0_10, %c0_11], %13 {strides = array<i32>} : memref<8x128xf32, #tpu.memory_space<vmem>>, vector<8x128xf32>,
    } else {
    }
    %c0_i32_6 = arith.constant 0 : i32
    %9 = arith.cmpi eq, %arg2, %c0_i32_6 : i32
    %10 = arith.extui %9 : i1 to i32
    %c0_i32_7 = arith.constant 0 : i32
    %11 = arith.cmpi ne, %10, %c0_i32_7 : i32
    scf.if %11 {
      %c0_8 = arith.constant 0 : index
      %c0_9 = arith.constant 0 : index
      %12 = vector.load %arg6[%c0_8, %c0_9] : memref<8x128xf32, #tpu.memory_space<vmem>>, vector<8x128xf32>
      %c0_10 = arith.constant 0 : index
      %c0_11 = arith.constant 0 : index
      %13 = vector.load %arg5[%c0_10, %c0_11] : memref<1x128xf32, #tpu.memory_space<vmem>>, vector<1x128xf32>
      %14 = vector.broadcast %13 : vector<1x128xf32> to vector<8x128xf32>
      %15 = arith.addf %12, %14 : vector<8x128xf32>
      %c0_12 = arith.constant 0 : index
      %c0_13 = arith.constant 0 : index
      %16 = vector.load %arg6[%c0_12, %c0_13] : memref<8x128xf32, #tpu.memory_space<vmem>>, vector<8x128xf32>
      tpu.vector_store %arg6[%c0_12, %c0_13], %15 {strides = array<i32>} : memref<8x128xf32, #tpu.memory_space<vmem>>, vector<8x128xf32>,
    } else {
    }
    return
  }
  func.func @transform_0(%arg0: i32, %arg1: i32, %arg2: i32) -> (i32, i32) {
    %c0_i32 = arith.constant 0 : i32
    return %arg0, %arg2 : i32, i32
  }
  func.func @transform_1(%arg0: i32, %arg1: i32, %arg2: i32) -> (i32, i32) {
    %c0_i32 = arith.constant 0 : i32
    return %arg2, %arg1 : i32, i32
  }
  func.func @transform_2(%arg0: i32, %arg1: i32, %arg2: i32) -> (i32, i32) {
    %c0_i32 = arith.constant 0 : i32
    %c0_i32_0 = arith.constant 0 : i32
    return %c0_i32, %arg1 : i32, i32
  }
  func.func @transform_3(%arg0: i32, %arg1: i32, %arg2: i32) -> (i32, i32) {
    %c0_i32 = arith.constant 0 : i32
    return %arg0, %arg1 : i32, i32
  }
}

</mosaic_0001>

<llo_original>
// kernel: _linear_pallas_call.1
$region0: #{_linear_pallas_call.1}
  #allocation0 [shape = 'u32[]', space=smem, size = 0x4, offset = 0x4, fixed_abs, tag = 'smem constant byte address 0x4 - core index']
  #allocation1 [shape = 'u32[144,128]{1,0:T(1,128)}', space=vmem, size = 0x12000, scoped, tag = 'internal scratch']
  %s0 = inlined_call_operand.vmem [shape: f32[8,128], index: 0, kind: input, shape index: {}]
  %s1 = inlined_call_operand.vmem [shape: f32[128,128], index: 1, kind: input, shape index: {}]
  %s2 = inlined_call_operand.vmem [shape: f32[1,128], index: 2, kind: input, shape index: {}]
  %s3 = inlined_call_operand.hbm [shape: f32[8,128], index: 3, kind: output, shape index: {}]
  %s4 = sld [smem:[#allocation0]]
  $region34: #{_linear_pallas_call.1} parent=0
    _
  %s6 = ssub.s32 1, %s4
  %s7 = scalar_select 0, %s6, %s4
  $region1: #{_linear_pallas_call.1} parent=0
    #allocation2 [shape = 'u8[4096]{0}', space=vmem, size = 0x1000, scoped, tag = 'output window, operand 0, single buffered']
    #allocation3 [shape = 's32[1]{0}', space=sflag, size = 0x4, scoped, tag = 'scoped memory for _linear_pallas_call.1']
    %8 = vsyncpa [#allocation3], 0
    // Predicated region
    $region2: #{_linear_pallas_call.1} parent=1 // pred_check
      _
    $region3: #{_linear_pallas_call.1} parent=1 // pred_check_branch
      %10 = sbr.rel (0) target = $region5
    $region4: #{_linear_pallas_call.1} parent=1 // pred_region
      _
    $region5: #{_linear_pallas_call.1} parent=1 // pred_fallthru
      _
    // Predicated region
    $region6: #{_linear_pallas_call.1} parent=1 // pred_check
      _
    $region7: #{_linear_pallas_call.1} parent=1 // pred_check_branch
      %12 = sbr.rel (0) target = $region9
    $region8: #{_linear_pallas_call.1} parent=1 // pred_region
      _
    $region9: #{_linear_pallas_call.1} parent=1 // pred_fallthru
      _
    // Predicated region
    $region10: #{_linear_pallas_call.1} parent=1 // pred_check
      _
    $region11: #{_linear_pallas_call.1} parent=1 // pred_check_branch
      %14 = sbr.rel (0) target = $region13
    $region12: #{_linear_pallas_call.1} parent=1 // pred_region
      _
    $region13: #{_linear_pallas_call.1} parent=1 // pred_fallthru
      _
    %v15 = vld [vmem:[%s0] sm:$0xff]
    %v16 = vld [vmem:[%s1] sm:$0xff]
    %v17 = vld [vmem:[%s1 + $0x8] sm:$0xff]
    %v18 = vld [vmem:[%s1 + $0x10] sm:$0xff]
    %v19 = vld [vmem:[%s1 + $0x18] sm:$0xff]
    %v20 = vld [vmem:[%s1 + $0x20] sm:$0xff]
    %v21 = vld [vmem:[%s1 + $0x28] sm:$0xff]
    %v22 = vld [vmem:[%s1 + $0x30] sm:$0xff]
    %v23 = vld [vmem:[%s1 + $0x38] sm:$0xff]
    %v24 = vld [vmem:[%s1 + $0x40] sm:$0xff]
    %v25 = vld [vmem:[%s1 + $0x48] sm:$0xff]
    %v26 = vld [vmem:[%s1 + $0x50] sm:$0xff]
    %v27 = vld [vmem:[%s1 + $0x58] sm:$0xff]
    %v28 = vld [vmem:[%s1 + $0x60] sm:$0xff]
    %v29 = vld [vmem:[%s1 + $0x68] sm:$0xff]
    %v30 = vld [vmem:[%s1 + $0x70] sm:$0xff]
    %v31 = vld [vmem:[%s1 + $0x78] sm:$0xff]
    %32 = vmatprep.subr.mxu0 0.0
    %33 = vmatpush1.msra.mxu0 %v16
    %34 = vmatprep.subr.mxu0 0.0
    %35 = vmatpush1.msra.mxu0 %v17
    %36 = vmatprep.subr.mxu0 0.0
    %37 = vmatpush1.msra.mxu0 %v18
    %38 = vmatprep.subr.mxu0 0.0
    %39 = vmatpush1.msra.mxu0 %v19
    %40 = vmatprep.subr.mxu0 0.0
    %41 = vmatpush1.msra.mxu0 %v20
    %42 = vmatprep.subr.mxu0 0.0
    %43 = vmatpush1.msra.mxu0 %v21
    %44 = vmatprep.subr.mxu0 0.0
    %45 = vmatpush1.msra.mxu0 %v22
    %46 = vmatprep.subr.mxu0 0.0
    %47 = vmatpush1.msra.mxu0 %v23
    %48 = vmatprep.subr.mxu0 0.0
    %49 = vmatpush1.msra.mxu0 %v24
    %50 = vmatprep.subr.mxu0 0.0
    %51 = vmatpush1.msra.mxu0 %v25
    %52 = vmatprep.subr.mxu0 0.0
    %53 = vmatpush1.msra.mxu0 %v26
    %54 = vmatprep.subr.mxu0 0.0
    %55 = vmatpush1.msra.mxu0 %v27
    %56 = vmatprep.subr.mxu0 0.0
    %57 = vmatpush1.msra.mxu0 %v28
    %58 = vmatprep.subr.mxu0 0.0
    %59 = vmatpush1.msra.mxu0 %v29
    %60 = vmatprep.subr.mxu0 0.0
    %61 = vmatpush1.msra.mxu0 %v30
    %62 = vmatprep.subr.mxu0 0.0
    %63 = vmatpush1.msra.mxu0 %v31
    %64 = vmatprep.subr.mxu0 0.0
    %65 = vmatpush1.msra.mxu0 0.0
    %66 = vmatprep.subr.mxu0 0.0
    %67 = vmatpush1.msra.mxu0 0.0
    %68 = vmatprep.subr.mxu0 0.0
    %69 = vmatpush1.msra.mxu0 0.0
    %70 = vmatprep.subr.mxu0 0.0
    %71 = vmatpush1.msra.mxu0 0.0
    %72 = vmatprep.subr.mxu0 0.0
    %73 = vmatpush1.msra.mxu0 0.0
    %74 = vmatprep.subr.mxu0 0.0
    %75 = vmatpush1.msra.mxu0 0.0
    %76 = vmatprep.subr.mxu0 0.0
    %77 = vmatpush1.msra.mxu0 0.0
    %78 = vmatprep.subr.mxu0 0.0
    %79 = vmatpush1.msra.mxu0 0.0
    %80 = vmatprep.subr.mxu0 0.0
    %81 = vmatpush1.msra.mxu0 0.0
    %82 = vmatprep.subr.mxu0 0.0
    %83 = vmatpush1.msra.mxu0 0.0
    %84 = vmatprep.subr.mxu0 0.0
    %85 = vmatpush1.msra.mxu0 0.0
    %86 = vmatprep.subr.mxu0 0.0
    %87 = vmatpush1.msra.mxu0 0.0
    %88 = vmatprep.subr.mxu0 0.0
    %89 = vmatpush1.msra.mxu0 0.0
    %90 = vmatprep.subr.mxu0 0.0
    %91 = vmatpush1.msra.mxu0 0.0
    %92 = vmatprep.subr.mxu0 0.0
    %93 = vmatpush1.msra.mxu0 0.0
    %94 = vmatprep.subr.mxu0 0.0
    %95 = vmatpush1.msra.mxu0 0.0
    %96 = vmatprep.mubr.f32.mxu0 0.0
    %97 = vmatmul.mubr.f32.gmra.mrb[0].mxu0 %v15
    %v98 = vpop.f32.mrb[0].mxu0
    %v99 = vadd.f32 0.0, %v98
    %v100 = vpop.f32.mrb[0].mxu0
    %101 = vdwg.mxu0
    %p102 = scmp.eq.s32.totalorder 0, 0
    // Predicated region
    $region14: #{_linear_pallas_call.1} parent=1 // pred_check
      %p103 = pneg %p102
    $region15: #{_linear_pallas_call.1} parent=1 // pred_check_branch
      %105 = sbr.rel (%p103) target = $region17
    $region16: #{_linear_pallas_call.1} parent=1 // pred_region
      %106 = vst [vmem:[#allocation2] sm:$0xff] %v99
    $region17: #{_linear_pallas_call.1} parent=1 // pred_fallthru
      _
    %p107 = scmp.gt.s32.totalorder 0, 0
    // Predicated region
    $region18: #{_linear_pallas_call.1} parent=1 // pred_check
      %p108 = pneg %p107
    $region19: #{_linear_pallas_call.1} parent=1 // pred_check_branch
      %110 = sbr.rel (%p108) target = $region21
    $region20: #{_linear_pallas_call.1} parent=1 // pred_region
      %v111 = vld [vmem:[#allocation2] sm:$0xff]
      %v112 = vadd.f32 %v111, %v99
      %113 = vst [vmem:[#allocation2] sm:$0xff] %v112
    $region21: #{_linear_pallas_call.1} parent=1 // pred_fallthru
      _
    // Predicated region
    $region22: #{_linear_pallas_call.1} parent=1 // pred_check
      %p114 = pneg %p102
    $region23: #{_linear_pallas_call.1} parent=1 // pred_check_branch
      %116 = sbr.rel (%p114) target = $region25
    $region24: #{_linear_pallas_call.1} parent=1 // pred_region
      %v117 = vld [vmem:[#allocation2] sm:$0xff]
      %v118 = vld [vmem:[%s2] sm:$0x1]
      %v120 = vlaneseq
      %v121 = vshrl.u32 %v120, 7
      %v122 = vsub.s32 0, %v121
      %v123 = vrot.slane %v118, %v122
      %v125 = vadd.f32 %v117, %v123
      %126 = vst [vmem:[#allocation2] sm:$0xff] %v125
    $region25: #{_linear_pallas_call.1} parent=1 // pred_fallthru
      _
    // Predicated region
    $region26: #{_linear_pallas_call.1} parent=1 // pred_check
      _
    $region27: #{_linear_pallas_call.1} parent=1 // pred_check_branch
      %128 = sbr.rel (0) target = $region29
    $region28: #{_linear_pallas_call.1} parent=1 // pred_region
      %s130 = ssub.s32 128, 128
      %131 = vsyncadd [#allocation3], %s130
      %s133 = sshll.u32 [#allocation2], 4
      %s134 = int_to_ptr.vmem [resolvable:$true] %s133
      %136 = dma.vmem_to_hbm [thread:$0]  %s134, 128, %s3, [#allocation3]
    $region29: #{_linear_pallas_call.1} parent=1 // pred_fallthru
      _
    // Predicated region
    $region30: #{_linear_pallas_call.1} parent=1 // pred_check
      _
    $region31: #{_linear_pallas_call.1} parent=1 // pred_check_branch
      %138 = sbr.rel (0) target = $region33
    $region32: #{_linear_pallas_call.1} parent=1 // pred_region
      %139 = dma.done [#allocation3], 128
    $region33: #{_linear_pallas_call.1} parent=1 // pred_fallthru
      _
    %140 = vsyncpa [#allocation3], 1

</llo_original>
